<compile_context>
chip_gen: v6e
topology: v6e:2x2x1
jax: 0.10.0
libtpu: 0.0.40
codegen_flags: <defaults>
</compile_context>

<pallas_src>
import functools

import jax
import jax.numpy as jnp
from jax.experimental import pallas as pl
from jax.experimental.pallas import tpu as pltpu

NEURONS = 64
HIDDEN_LAYERS = 4
OUT_FEATURES = 10            # policy output size
N_GM = 1 + HIDDEN_LAYERS     # LazyLinear + hidden linears
N_HEAD = 3                   # layers per head (policy & value, fused pairwise)
HPAD = 128                   # lane-padded width of every hidden / head layer
HALF = 64                    # lane offset where the value-head segment starts
MAX_TB = 512                 # max batch rows per grid step (sweepable)


def _round_up(n, m):
    return ((n + m - 1) // m) * m


def mlp_kernel(x_ref, *refs):
    """refs = [w0, b0, ..., w7, b7, out_ref]; all widths padded to 128 lanes.

    Layers 0..N_GM-1         : Linear + SiLU (general module).
    Layers N_GM..N_GM+N_HEAD : fused policy/value head layers -- each weight
    holds the policy layer in output lanes [0, 64) and the value layer in
    output lanes [64, 128). ReLU is applied to policy lanes, Tanh to value
    lanes on intermediate head layers; the LAST head layer stores its
    pre-activation (final ReLU/Tanh happen in the wrapper on the sliced
    outputs). Padded lanes carry exact zeros throughout (zero weights/biases
    and 0->0 activations).
    """
    out_ref = refs[-1]
    wb = refs[:-1]

    h = x_ref[...]                                   # bf16 (TB, F_pad)

    # General module: Linear + SiLU. bf16 MXU operands, f32 accumulate;
    # one fused f32 expression per layer (minimal live temporaries, v5e-safe).
    for li in range(N_GM):
        w = wb[2 * li][...]                          # bf16
        b = wb[2 * li + 1][...]                      # f32 (1, 128)
        z = jnp.dot(h, w, preferred_element_type=jnp.float32) + b
        # SiLU: sigmoid via EUP exp + approximate reciprocal (EUP slot).
        h = (z * pl.reciprocal(1.0 + jnp.exp(-z), approx=True)
             ).astype(jnp.bfloat16)

    # Fused heads: ReLU on lanes [0,64), Tanh on lanes [64,128).
    # (1, HPAD) mask row; broadcasting inside jnp.where does the expansion.
    is_policy = jax.lax.broadcasted_iota(jnp.int32, (1, HPAD), 1) < HALF
    for li in range(N_HEAD):
        w = wb[2 * (N_GM + li)][...]
        b = wb[2 * (N_GM + li) + 1][...]
        z = jnp.dot(h, w, preferred_element_type=jnp.float32) + b
        if li == N_HEAD - 1:
            # Pre-activation store; wrapper applies ReLU/Tanh to the slices.
            out_ref[...] = z.astype(out_ref.dtype)
        else:
            h = jnp.where(is_policy, jnp.maximum(z, 0.0), jnp.tanh(z)
                          ).astype(jnp.bfloat16)


def head_layer_dims(start_neurons, target, n_layers):
    """Replicates the PyTorch float-step / int() layer-size logic."""
    delta = target - start_neurons
    step = delta / n_layers
    prev = float(start_neurons)
    dims = []
    for _ in range(n_layers):
        cur = prev + step
        dims.append((int(prev), int(cur)))
        prev = cur
    return dims


def init_linear(key, fan_in, fan_out):
    """Deterministic init matching nn.Linear's U(-1/sqrt(in), 1/sqrt(in))."""
    kw, kb = jax.random.split(key)
    bound = 1.0 / jnp.sqrt(jnp.float32(fan_in))
    w = jax.random.uniform(kw, (fan_in, fan_out), jnp.float32, -bound, bound)
    b = jax.random.uniform(kb, (fan_out,), jnp.float32, -bound, bound)
    return w, b


def init_params(key, in_features, out_features):
    # TODO(synk): nn.LazyLinear infers in_features at the first forward call;
    # here it is fixed to the flattened input size at construction time.
    layer_dims = [(in_features, NEURONS)] + [(NEURONS, NEURONS)] * HIDDEN_LAYERS
    ph_dims = head_layer_dims(NEURONS, out_features, N_HEAD)
    vh_dims = head_layer_dims(NEURONS, 1, N_HEAD)
    all_dims = layer_dims + ph_dims + vh_dims
    keys = jax.random.split(key, len(all_dims))
    params = [init_linear(k, fi, fo) for k, (fi, fo) in zip(keys, all_dims)]
    gm = params[:N_GM]
    ph = params[N_GM:N_GM + N_HEAD]
    vh = params[N_GM + N_HEAD:]
    return gm, ph, vh


def pack_params(gm_params, ph_params, vh_params, f_pad):
    """Zero-pad all widths to 128 lanes and fuse policy/value head pairs."""
    packed = []
    # general module layers
    for li, (w, b) in enumerate(gm_params):
        fin = f_pad if li == 0 else HPAD
        wp = jnp.zeros((fin, HPAD), jnp.float32)
        wp = wp.at[:w.shape[0], :w.shape[1]].set(w)
        bp = jnp.zeros((HPAD,), jnp.float32).at[:b.shape[0]].set(b)
        packed.append((wp, bp))
    # fused head layers: policy block in lanes [0,64), value block in [64,128)
    for li in range(N_HEAD):
        wp_, bp_ = ph_params[li]
        wv_, bv_ = vh_params[li]
        assert wp_.shape[1] <= HALF and wv_.shape[1] <= HPAD - HALF
        w = jnp.zeros((HPAD, HPAD), jnp.float32)
        b = jnp.zeros((HPAD,), jnp.float32)
        w = w.at[:wp_.shape[0], :wp_.shape[1]].set(wp_)
        b = b.at[:bp_.shape[0]].set(bp_)
        row0 = 0 if li == 0 else HALF        # layer 0 reads the shared h lanes
        w = w.at[row0:row0 + wv_.shape[0], HALF:HALF + wv_.shape[1]].set(wv_)
        b = b.at[HALF:HALF + bv_.shape[0]].set(bv_)
        packed.append((w, b))
    return packed


def prepare_params(gm_params, ph_params, vh_params, in_features):
    """One-time pad / fuse / cast of all weights (run OUTSIDE the jitted
    forward so the per-call path contains only the pallas_call)."""
    f_pad = _round_up(in_features, 128)
    packed = pack_params(gm_params, ph_params, vh_params, f_pad)
    flat = []
    for w, b in packed:
        flat.append(jnp.asarray(w, jnp.bfloat16))                 # MXU operand
        flat.append(jnp.asarray(b, jnp.float32).reshape(1, HPAD))  # f32 bias row
    return tuple(flat)


@functools.partial(jax.jit, static_argnames=("out_features",))
def mlp_forward(x, packed, *, out_features=OUT_FEATURES):
    B = x.shape[0]
    x_flat = x.reshape(B, -1)                         # nn.Flatten (row-major)
    F = x_flat.shape[1]
    f_pad = packed[0].shape[0]                        # padded input width of W0
    assert F <= f_pad, "packed params were prepared for a smaller input"

    # Batch tile: 8-row sublane floor, up to MAX_TB rows per grid step.
    # Per-step VMEM at F_pad=256, tb=512 is ~2 MiB (x + out double-buffered
    # + ~300 KiB resident weights) -- far below every generation's limit.
    tb = min(MAX_TB, _round_up(B, 8))
    # If the whole batch fits one step, halve the tile (down to the 8-row
    # floor) so the grid has >= 2 steps and "parallel" can use both v7x cores.
    if _round_up(B, tb) // tb < 2 and tb > 8:
        tb = max(8, _round_up(tb // 2, 8))
    b_pad = _round_up(B, tb)

    x_p = jnp.zeros((b_pad, f_pad), jnp.bfloat16)
    x_p = x_p.at[:B, :F].set(x_flat.astype(jnp.bfloat16))

    # TODO(synk): for image-scale flattened inputs (f_pad >= ~8K) add a
    # K-tiled layer-0 path (2nd grid axis + f32 accumulator scratch) so the
    # batch tile can stay large within v7x's smaller scoped-VMEM budget.
    in_specs = [pl.BlockSpec((tb, f_pad), lambda i: (i, 0))]      # batch-tiled
    for a in packed:
        in_specs.append(pl.BlockSpec(a.shape, lambda i: (0, 0)))  # VMEM-resident

    out = pl.pallas_call(
        mlp_kernel,
        grid=(b_pad // tb,),
        in_specs=in_specs,
        out_specs=pl.BlockSpec((tb, HPAD), lambda i: (i, 0)),
        out_shape=jax.ShapeDtypeStruct((b_pad, HPAD), jnp.float32),
        compiler_params=pltpu.CompilerParams(
            dimension_semantics=("parallel",)),
    )(x_p, *packed)

    # Final head activations on the tiny useful slices (fused for free by XLA):
    # policy pre-activation in lanes [0, out_features), value pre-act in lane 64.
    policy = jax.nn.relu(out[:B, :out_features])
    value = jnp.tanh(out[:B, HALF:HALF + 1])
    return policy, value


def mlp_forward_ref(x, gm_params, ph_params, vh_params):
    """Pure-JAX reference using the same bf16-operand / f32-accumulate math."""
    def mm(a, w):
        return jnp.dot(a.astype(jnp.bfloat16), w.astype(jnp.bfloat16),
                       preferred_element_type=jnp.float32)
    h = x.reshape(x.shape[0], -1).astype(jnp.float32)
    for w, b in gm_params:
        h = jax.nn.silu(mm(h, w) + b)
    p = h
    for w, b in ph_params:
        p = jax.nn.relu(mm(p, w) + b)
    v = h
    for w, b in vh_params:
        v = jnp.tanh(mm(v, w) + b)
    return p, v


if __name__ == "__main__":
    key = jax.random.PRNGKey(0)
    kx, kp = jax.random.split(key)

    # Small NCHW input, flattened feature dim = 4*8*8 = 256.
    x = jax.random.normal(kx, (2, 4, 8, 8), jnp.float32)
    in_features = 4 * 8 * 8

    gm, ph, vh = init_params(kp, in_features, OUT_FEATURES)
    packed = prepare_params(gm, ph, vh, in_features)   # one-time pad/fuse/cast

    policy, value = mlp_forward(x, packed, out_features=OUT_FEATURES)
    policy = jax.block_until_ready(policy)
    value = jax.block_until_ready(value)

    policy_ref, value_ref = mlp_forward_ref(x, gm, ph, vh)
    assert policy.shape == (2, OUT_FEATURES) and value.shape == (2, 1)
    assert jnp.allclose(policy, policy_ref, atol=2e-2, rtol=2e-2)
    assert jnp.allclose(value, value_ref, atol=2e-2, rtol=2e-2)

    print("KERNEL_OK")
</pallas_src>

<mosaic_0001>
module attributes {stable_mosaic.version = 11 : i64} {
  func.func @mlp_kernel(%arg0: i32, %arg1: memref<8x256xbf16, #tpu.memory_space<vmem>>, %arg2: memref<256x128xbf16, #tpu.memory_space<vmem>>, %arg3: memref<1x128xf32, #tpu.memory_space<vmem>>, %arg4: memref<128x128xbf16, #tpu.memory_space<vmem>>, %arg5: memref<1x128xf32, #tpu.memory_space<vmem>>, %arg6: memref<128x128xbf16, #tpu.memory_space<vmem>>, %arg7: memref<1x128xf32, #tpu.memory_space<vmem>>, %arg8: memref<128x128xbf16, #tpu.memory_space<vmem>>, %arg9: memref<1x128xf32, #tpu.memory_space<vmem>>, %arg10: memref<128x128xbf16, #tpu.memory_space<vmem>>, %arg11: memref<1x128xf32, #tpu.memory_space<vmem>>, %arg12: memref<128x128xbf16, #tpu.memory_space<vmem>>, %arg13: memref<1x128xf32, #tpu.memory_space<vmem>>, %arg14: memref<128x128xbf16, #tpu.memory_space<vmem>>, %arg15: memref<1x128xf32, #tpu.memory_space<vmem>>, %arg16: memref<128x128xbf16, #tpu.memory_space<vmem>>, %arg17: memref<1x128xf32, #tpu.memory_space<vmem>>, %arg18: memref<8x128xf32, #tpu.memory_space<vmem>>) attributes {dimension_semantics = [#tpu.dimension_semantics<parallel>], iteration_bounds = array<i64: 1>, scalar_prefetch = 0 : i64, scratch_operands = 0 : i64, tpu.core_type = #tpu.core_type<tc>, window_params = [{transform_indices = @transform_0, window_bounds = array<i64: 8, 256>}, {pipeline_mode = #tpu.pipeline_mode<synchronous>, transform_indices = @transform_1, window_bounds = array<i64: 256, 128>}, {pipeline_mode = #tpu.pipeline_mode<synchronous>, transform_indices = @transform_2, window_bounds = array<i64: 1, 128>}, {pipeline_mode = #tpu.pipeline_mode<synchronous>, transform_indices = @transform_3, window_bounds = array<i64: 128, 128>}, {pipeline_mode = #tpu.pipeline_mode<synchronous>, transform_indices = @transform_4, window_bounds = array<i64: 1, 128>}, {pipeline_mode = #tpu.pipeline_mode<synchronous>, transform_indices = @transform_5, window_bounds = array<i64: 128, 128>}, {pipeline_mode = #tpu.pipeline_mode<synchronous>, transform_indices = @transform_6, window_bounds = array<i64: 1, 128>}, {pipeline_mode = #tpu.pipeline_mode<synchronous>, transform_indices = @transform_7, window_bounds = array<i64: 128, 128>}, {pipeline_mode = #tpu.pipeline_mode<synchronous>, transform_indices = @transform_8, window_bounds = array<i64: 1, 128>}, {pipeline_mode = #tpu.pipeline_mode<synchronous>, transform_indices = @transform_9, window_bounds = array<i64: 128, 128>}, {pipeline_mode = #tpu.pipeline_mode<synchronous>, transform_indices = @transform_10, window_bounds = array<i64: 1, 128>}, {pipeline_mode = #tpu.pipeline_mode<synchronous>, transform_indices = @transform_11, window_bounds = array<i64: 128, 128>}, {pipeline_mode = #tpu.pipeline_mode<synchronous>, transform_indices = @transform_12, window_bounds = array<i64: 1, 128>}, {pipeline_mode = #tpu.pipeline_mode<synchronous>, transform_indices = @transform_13, window_bounds = array<i64: 128, 128>}, {pipeline_mode = #tpu.pipeline_mode<synchronous>, transform_indices = @transform_14, window_bounds = array<i64: 1, 128>}, {pipeline_mode = #tpu.pipeline_mode<synchronous>, transform_indices = @transform_15, window_bounds = array<i64: 128, 128>}, {pipeline_mode = #tpu.pipeline_mode<synchronous>, transform_indices = @transform_16, window_bounds = array<i64: 1, 128>}, {transform_indices = @transform_17, window_bounds = array<i64: 8, 128>}]} {
    %c0 = arith.constant 0 : index
    %c0_0 = arith.constant 0 : index
    %0 = vector.load %arg1[%c0, %c0_0] : memref<8x256xbf16, #tpu.memory_space<vmem>>, vector<8x256xbf16>
    %c0_1 = arith.constant 0 : index
    %c0_2 = arith.constant 0 : index
    %1 = vector.load %arg2[%c0_1, %c0_2] : memref<256x128xbf16, #tpu.memory_space<vmem>>, vector<256x128xbf16>
    %c0_3 = arith.constant 0 : index
    %c0_4 = arith.constant 0 : index
    %2 = vector.load %arg3[%c0_3, %c0_4] : memref<1x128xf32, #tpu.memory_space<vmem>>, vector<1x128xf32>
    %cst = arith.constant dense<0.000000e+00> : vector<8x128xf32>
    %3 = tpu.matmul %0, %1, %cst {dimension_numbers = #tpu.dot_dimension_numbers<[1], [0], [0], [1], [0, 0, 1, 1], [], []>} : vector<8x256xbf16>, vector<256x128xbf16>, vector<8x128xf32> -> vector<8x128xf32>
    %4 = vector.broadcast %2 : vector<1x128xf32> to vector<8x128xf32>
    %5 = arith.addf %3, %4 : vector<8x128xf32>
    %cst_5 = arith.constant 0.000000e+00 : f32
    %6 = vector.broadcast %cst_5 : f32 to vector<8x128xf32>
    %7 = arith.subf %6, %5 : vector<8x128xf32>
    %8 = math.exp %7 : vector<8x128xf32>
    %cst_6 = arith.constant 1.000000e+00 : f32
    %9 = vector.broadcast %cst_6 : f32 to vector<8x128xf32>
    %10 = arith.addf %9, %8 : vector<8x128xf32>
    %11 = tpu.reciprocal %10 {approx = true} : vector<8x128xf32> -> vector<8x128xf32>
    %12 = arith.mulf %5, %11 : vector<8x128xf32>
    %13 = arith.truncf %12 : vector<8x128xf32> to vector<8x128xbf16>
    %c0_7 = arith.constant 0 : index
    %c0_8 = arith.constant 0 : index
    %14 = vector.load %arg4[%c0_7, %c0_8] : memref<128x128xbf16, #tpu.memory_space<vmem>>, vector<128x128xbf16>
    %c0_9 = arith.constant 0 : index
    %c0_10 = arith.constant 0 : index
    %15 = vector.load %arg5[%c0_9, %c0_10] : memref<1x128xf32, #tpu.memory_space<vmem>>, vector<1x128xf32>
    %cst_11 = arith.constant dense<0.000000e+00> : vector<8x128xf32>
    %16 = tpu.matmul %13, %14, %cst_11 {dimension_numbers = #tpu.dot_dimension_numbers<[1], [0], [0], [1], [0, 0, 1, 1], [], []>} : vector<8x128xbf16>, vector<128x128xbf16>, vector<8x128xf32> -> vector<8x128xf32>
    %17 = vector.broadcast %15 : vector<1x128xf32> to vector<8x128xf32>
    %18 = arith.addf %16, %17 : vector<8x128xf32>
    %cst_12 = arith.constant 0.000000e+00 : f32
    %19 = vector.broadcast %cst_12 : f32 to vector<8x128xf32>
    %20 = arith.subf %19, %18 : vector<8x128xf32>
    %21 = math.exp %20 : vector<8x128xf32>
    %cst_13 = arith.constant 1.000000e+00 : f32
    %22 = vector.broadcast %cst_13 : f32 to vector<8x128xf32>
    %23 = arith.addf %22, %21 : vector<8x128xf32>
    %24 = tpu.reciprocal %23 {approx = true} : vector<8x128xf32> -> vector<8x128xf32>
    %25 = arith.mulf %18, %24 : vector<8x128xf32>
    %26 = arith.truncf %25 : vector<8x128xf32> to vector<8x128xbf16>
    %c0_14 = arith.constant 0 : index
    %c0_15 = arith.constant 0 : index
    %27 = vector.load %arg6[%c0_14, %c0_15] : memref<128x128xbf16, #tpu.memory_space<vmem>>, vector<128x128xbf16>
    %c0_16 = arith.constant 0 : index
    %c0_17 = arith.constant 0 : index
    %28 = vector.load %arg7[%c0_16, %c0_17] : memref<1x128xf32, #tpu.memory_space<vmem>>, vector<1x128xf32>
    %cst_18 = arith.constant dense<0.000000e+00> : vector<8x128xf32>
    %29 = tpu.matmul %26, %27, %cst_18 {dimension_numbers = #tpu.dot_dimension_numbers<[1], [0], [0], [1], [0, 0, 1, 1], [], []>} : vector<8x128xbf16>, vector<128x128xbf16>, vector<8x128xf32> -> vector<8x128xf32>
    %30 = vector.broadcast %28 : vector<1x128xf32> to vector<8x128xf32>
    %31 = arith.addf %29, %30 : vector<8x128xf32>
    %cst_19 = arith.constant 0.000000e+00 : f32
    %32 = vector.broadcast %cst_19 : f32 to vector<8x128xf32>
    %33 = arith.subf %32, %31 : vector<8x128xf32>
    %34 = math.exp %33 : vector<8x128xf32>
    %cst_20 = arith.constant 1.000000e+00 : f32
    %35 = vector.broadcast %cst_20 : f32 to vector<8x128xf32>
    %36 = arith.addf %35, %34 : vector<8x128xf32>
    %37 = tpu.reciprocal %36 {approx = true} : vector<8x128xf32> -> vector<8x128xf32>
    %38 = arith.mulf %31, %37 : vector<8x128xf32>
    %39 = arith.truncf %38 : vector<8x128xf32> to vector<8x128xbf16>
    %c0_21 = arith.constant 0 : index
    %c0_22 = arith.constant 0 : index
    %40 = vector.load %arg8[%c0_21, %c0_22] : memref<128x128xbf16, #tpu.memory_space<vmem>>, vector<128x128xbf16>
    %c0_23 = arith.constant 0 : index
    %c0_24 = arith.constant 0 : index
    %41 = vector.load %arg9[%c0_23, %c0_24] : memref<1x128xf32, #tpu.memory_space<vmem>>, vector<1x128xf32>
    %cst_25 = arith.constant dense<0.000000e+00> : vector<8x128xf32>
    %42 = tpu.matmul %39, %40, %cst_25 {dimension_numbers = #tpu.dot_dimension_numbers<[1], [0], [0], [1], [0, 0, 1, 1], [], []>} : vector<8x128xbf16>, vector<128x128xbf16>, vector<8x128xf32> -> vector<8x128xf32>
    %43 = vector.broadcast %41 : vector<1x128xf32> to vector<8x128xf32>
    %44 = arith.addf %42, %43 : vector<8x128xf32>
    %cst_26 = arith.constant 0.000000e+00 : f32
    %45 = vector.broadcast %cst_26 : f32 to vector<8x128xf32>
    %46 = arith.subf %45, %44 : vector<8x128xf32>
    %47 = math.exp %46 : vector<8x128xf32>
    %cst_27 = arith.constant 1.000000e+00 : f32
    %48 = vector.broadcast %cst_27 : f32 to vector<8x128xf32>
    %49 = arith.addf %48, %47 : vector<8x128xf32>
    %50 = tpu.reciprocal %49 {approx = true} : vector<8x128xf32> -> vector<8x128xf32>
    %51 = arith.mulf %44, %50 : vector<8x128xf32>
    %52 = arith.truncf %51 : vector<8x128xf32> to vector<8x128xbf16>
    %c0_28 = arith.constant 0 : index
    %c0_29 = arith.constant 0 : index
    %53 = vector.load %arg10[%c0_28, %c0_29] : memref<128x128xbf16, #tpu.memory_space<vmem>>, vector<128x128xbf16>
    %c0_30 = arith.constant 0 : index
    %c0_31 = arith.constant 0 : index
    %54 = vector.load %arg11[%c0_30, %c0_31] : memref<1x128xf32, #tpu.memory_space<vmem>>, vector<1x128xf32>
    %cst_32 = arith.constant dense<0.000000e+00> : vector<8x128xf32>
    %55 = tpu.matmul %52, %53, %cst_32 {dimension_numbers = #tpu.dot_dimension_numbers<[1], [0], [0], [1], [0, 0, 1, 1], [], []>} : vector<8x128xbf16>, vector<128x128xbf16>, vector<8x128xf32> -> vector<8x128xf32>
    %56 = vector.broadcast %54 : vector<1x128xf32> to vector<8x128xf32>
    %57 = arith.addf %55, %56 : vector<8x128xf32>
    %cst_33 = arith.constant 0.000000e+00 : f32
    %58 = vector.broadcast %cst_33 : f32 to vector<8x128xf32>
    %59 = arith.subf %58, %57 : vector<8x128xf32>
    %60 = math.exp %59 : vector<8x128xf32>
    %cst_34 = arith.constant 1.000000e+00 : f32
    %61 = vector.broadcast %cst_34 : f32 to vector<8x128xf32>
    %62 = arith.addf %61, %60 : vector<8x128xf32>
    %63 = tpu.reciprocal %62 {approx = true} : vector<8x128xf32> -> vector<8x128xf32>
    %64 = arith.mulf %57, %63 : vector<8x128xf32>
    %65 = arith.truncf %64 : vector<8x128xf32> to vector<8x128xbf16>
    %66 = tpu.iota {dimensions = array<i32: 1>} : vector<1x128xi32>
    %c64_i32 = arith.constant 64 : i32
    %67 = vector.broadcast %c64_i32 : i32 to vector<1x128xi32>
    %68 = arith.cmpi slt, %66, %67 : vector<1x128xi32>
    %c0_35 = arith.constant 0 : index
    %c0_36 = arith.constant 0 : index
    %69 = vector.load %arg12[%c0_35, %c0_36] : memref<128x128xbf16, #tpu.memory_space<vmem>>, vector<128x128xbf16>
    %c0_37 = arith.constant 0 : index
    %c0_38 = arith.constant 0 : index
    %70 = vector.load %arg13[%c0_37, %c0_38] : memref<1x128xf32, #tpu.memory_space<vmem>>, vector<1x128xf32>
    %cst_39 = arith.constant dense<0.000000e+00> : vector<8x128xf32>
    %71 = tpu.matmul %65, %69, %cst_39 {dimension_numbers = #tpu.dot_dimension_numbers<[1], [0], [0], [1], [0, 0, 1, 1], [], []>} : vector<8x128xbf16>, vector<128x128xbf16>, vector<8x128xf32> -> vector<8x128xf32>
    %72 = vector.broadcast %70 : vector<1x128xf32> to vector<8x128xf32>
    %73 = arith.addf %71, %72 : vector<8x128xf32>
    %cst_40 = arith.constant 0.000000e+00 : f32
    %74 = vector.broadcast %cst_40 : f32 to vector<8x128xf32>
    %75 = arith.maximumf %73, %74 : vector<8x128xf32>
    %76 = math.tanh %73 : vector<8x128xf32>
    %77 = vector.shape_cast %68 : vector<1x128xi1> to vector<1x128xi1>
    %78 = vector.broadcast %77 : vector<1x128xi1> to vector<8x128xi1>
    %79 = arith.select %78, %75, %76 : vector<8x128xi1>, vector<8x128xf32>
    %80 = arith.truncf %79 : vector<8x128xf32> to vector<8x128xbf16>
    %c0_41 = arith.constant 0 : index
    %c0_42 = arith.constant 0 : index
    %81 = vector.load %arg14[%c0_41, %c0_42] : memref<128x128xbf16, #tpu.memory_space<vmem>>, vector<128x128xbf16>
    %c0_43 = arith.constant 0 : index
    %c0_44 = arith.constant 0 : index
    %82 = vector.load %arg15[%c0_43, %c0_44] : memref<1x128xf32, #tpu.memory_space<vmem>>, vector<1x128xf32>
    %cst_45 = arith.constant dense<0.000000e+00> : vector<8x128xf32>
    %83 = tpu.matmul %80, %81, %cst_45 {dimension_numbers = #tpu.dot_dimension_numbers<[1], [0], [0], [1], [0, 0, 1, 1], [], []>} : vector<8x128xbf16>, vector<128x128xbf16>, vector<8x128xf32> -> vector<8x128xf32>
    %84 = vector.broadcast %82 : vector<1x128xf32> to vector<8x128xf32>
    %85 = arith.addf %83, %84 : vector<8x128xf32>
    %cst_46 = arith.constant 0.000000e+00 : f32
    %86 = vector.broadcast %cst_46 : f32 to vector<8x128xf32>
    %87 = arith.maximumf %85, %86 : vector<8x128xf32>
    %88 = math.tanh %85 : vector<8x128xf32>
    %89 = vector.shape_cast %68 : vector<1x128xi1> to vector<1x128xi1>
    %90 = vector.broadcast %89 : vector<1x128xi1> to vector<8x128xi1>
    %91 = arith.select %90, %87, %88 : vector<8x128xi1>, vector<8x128xf32>
    %92 = arith.truncf %91 : vector<8x128xf32> to vector<8x128xbf16>
    %c0_47 = arith.constant 0 : index
    %c0_48 = arith.constant 0 : index
    %93 = vector.load %arg16[%c0_47, %c0_48] : memref<128x128xbf16, #tpu.memory_space<vmem>>, vector<128x128xbf16>
    %c0_49 = arith.constant 0 : index
    %c0_50 = arith.constant 0 : index
    %94 = vector.load %arg17[%c0_49, %c0_50] : memref<1x128xf32, #tpu.memory_space<vmem>>, vector<1x128xf32>
    %cst_51 = arith.constant dense<0.000000e+00> : vector<8x128xf32>
    %95 = tpu.matmul %92, %93, %cst_51 {dimension_numbers = #tpu.dot_dimension_numbers<[1], [0], [0], [1], [0, 0, 1, 1], [], []>} : vector<8x128xbf16>, vector<128x128xbf16>, vector<8x128xf32> -> vector<8x128xf32>
    %96 = vector.broadcast %94 : vector<1x128xf32> to vector<8x128xf32>
    %97 = arith.addf %95, %96 : vector<8x128xf32>
    %c0_52 = arith.constant 0 : index
    %c0_53 = arith.constant 0 : index
    %98 = vector.load %arg18[%c0_52, %c0_53] : memref<8x128xf32, #tpu.memory_space<vmem>>, vector<8x128xf32>
    tpu.vector_store %arg18[%c0_52, %c0_53], %97 {strides = array<i32>} : memref<8x128xf32, #tpu.memory_space<vmem>>, vector<8x128xf32>,
    return
  }
  func.func @transform_0(%arg0: i32) -> (i32, i32) {
    %c0_i32 = arith.constant 0 : i32
    %c0_i32_0 = arith.constant 0 : i32
    return %arg0, %c0_i32 : i32, i32
  }
  func.func @transform_1(%arg0: i32) -> (i32, i32) {
    %c0_i32 = arith.constant 0 : i32
    %c0_i32_0 = arith.constant 0 : i32
    %c0_i32_1 = arith.constant 0 : i32
    return %c0_i32, %c0_i32_0 : i32, i32
  }
  func.func @transform_2(%arg0: i32) -> (i32, i32) {
    %c0_i32 = arith.constant 0 : i32
    %c0_i32_0 = arith.constant 0 : i32
    %c0_i32_1 = arith.constant 0 : i32
    return %c0_i32, %c0_i32_0 : i32, i32
  }
  func.func @transform_3(%arg0: i32) -> (i32, i32) {
    %c0_i32 = arith.constant 0 : i32
    %c0_i32_0 = arith.constant 0 : i32
    %c0_i32_1 = arith.constant 0 : i32
    return %c0_i32, %c0_i32_0 : i32, i32
  }
  func.func @transform_4(%arg0: i32) -> (i32, i32) {
    %c0_i32 = arith.constant 0 : i32
    %c0_i32_0 = arith.constant 0 : i32
    %c0_i32_1 = arith.constant 0 : i32
    return %c0_i32, %c0_i32_0 : i32, i32
  }
  func.func @transform_5(%arg0: i32) -> (i32, i32) {
    %c0_i32 = arith.constant 0 : i32
    %c0_i32_0 = arith.constant 0 : i32
    %c0_i32_1 = arith.constant 0 : i32
    return %c0_i32, %c0_i32_0 : i32, i32
  }
  func.func @transform_6(%arg0: i32) -> (i32, i32) {
    %c0_i32 = arith.constant 0 : i32
    %c0_i32_0 = arith.constant 0 : i32
    %c0_i32_1 = arith.constant 0 : i32
    return %c0_i32, %c0_i32_0 : i32, i32
  }
  func.func @transform_7(%arg0: i32) -> (i32, i32) {
    %c0_i32 = arith.constant 0 : i32
    %c0_i32_0 = arith.constant 0 : i32
    %c0_i32_1 = arith.constant 0 : i32
    return %c0_i32, %c0_i32_0 : i32, i32
  }
  func.func @transform_8(%arg0: i32) -> (i32, i32) {
    %c0_i32 = arith.constant 0 : i32
    %c0_i32_0 = arith.constant 0 : i32
    %c0_i32_1 = arith.constant 0 : i32
    return %c0_i32, %c0_i32_0 : i32, i32
  }
  func.func @transform_9(%arg0: i32) -> (i32, i32) {
    %c0_i32 = arith.constant 0 : i32
    %c0_i32_0 = arith.constant 0 : i32
    %c0_i32_1 = arith.constant 0 : i32
    return %c0_i32, %c0_i32_0 : i32, i32
  }
  func.func @transform_10(%arg0: i32) -> (i32, i32) {
    %c0_i32 = arith.constant 0 : i32
    %c0_i32_0 = arith.constant 0 : i32
    %c0_i32_1 = arith.constant 0 : i32
    return %c0_i32, %c0_i32_0 : i32, i32
  }
  func.func @transform_11(%arg0: i32) -> (i32, i32) {
    %c0_i32 = arith.constant 0 : i32
    %c0_i32_0 = arith.constant 0 : i32
    %c0_i32_1 = arith.constant 0 : i32
    return %c0_i32, %c0_i32_0 : i32, i32
  }
  func.func @transform_12(%arg0: i32) -> (i32, i32) {
    %c0_i32 = arith.constant 0 : i32
    %c0_i32_0 = arith.constant 0 : i32
    %c0_i32_1 = arith.constant 0 : i32
    return %c0_i32, %c0_i32_0 : i32, i32
  }
  func.func @transform_13(%arg0: i32) -> (i32, i32) {
    %c0_i32 = arith.constant 0 : i32
    %c0_i32_0 = arith.constant 0 : i32
    %c0_i32_1 = arith.constant 0 : i32
    return %c0_i32, %c0_i32_0 : i32, i32
  }
  func.func @transform_14(%arg0: i32) -> (i32, i32) {
    %c0_i32 = arith.constant 0 : i32
    %c0_i32_0 = arith.constant 0 : i32
    %c0_i32_1 = arith.constant 0 : i32
    return %c0_i32, %c0_i32_0 : i32, i32
  }
  func.func @transform_15(%arg0: i32) -> (i32, i32) {
    %c0_i32 = arith.constant 0 : i32
    %c0_i32_0 = arith.constant 0 : i32
    %c0_i32_1 = arith.constant 0 : i32
    return %c0_i32, %c0_i32_0 : i32, i32
  }
  func.func @transform_16(%arg0: i32) -> (i32, i32) {
    %c0_i32 = arith.constant 0 : i32
    %c0_i32_0 = arith.constant 0 : i32
    %c0_i32_1 = arith.constant 0 : i32
    return %c0_i32, %c0_i32_0 : i32, i32
  }
  func.func @transform_17(%arg0: i32) -> (i32, i32) {
    %c0_i32 = arith.constant 0 : i32
    %c0_i32_0 = arith.constant 0 : i32
    return %arg0, %c0_i32 : i32, i32
  }
}

</mosaic_0001>

<llo_original>
// kernel: mlp_forward.1
$region0: #{mlp_forward.1}
  #allocation0 [shape = 'u32[]', space=smem, size = 0x4, offset = 0x4, fixed_abs, tag = 'smem constant byte address 0x4 - core index']
  #allocation1 [shape = 'u32[144,128]{1,0:T(1,128)}', space=vmem, size = 0x12000, scoped, tag = 'internal scratch']
  %s0 = inlined_call_operand.vmem [shape: bf16[8,256], index: 0, kind: input, shape index: {}]
  %s1 = inlined_call_operand.vmem [shape: bf16[256,128], index: 1, kind: input, shape index: {}]
  %s2 = inlined_call_operand.vmem [shape: f32[1,128], index: 2, kind: input, shape index: {}]
  %s3 = inlined_call_operand.hbm [shape: bf16[128,128], index: 3, kind: input, shape index: {}]
  %s4 = inlined_call_operand.vmem [shape: f32[1,128], index: 4, kind: input, shape index: {}]
  %s5 = inlined_call_operand.hbm [shape: bf16[128,128], index: 5, kind: input, shape index: {}]
  %s6 = inlined_call_operand.vmem [shape: f32[1,128], index: 6, kind: input, shape index: {}]
  %s7 = inlined_call_operand.hbm [shape: bf16[128,128], index: 7, kind: input, shape index: {}]
  %s8 = inlined_call_operand.vmem [shape: f32[1,128], index: 8, kind: input, shape index: {}]
  %s9 = inlined_call_operand.hbm [shape: bf16[128,128], index: 9, kind: input, shape index: {}]
  %s10 = inlined_call_operand.vmem [shape: f32[1,128], index: 10, kind: input, shape index: {}]
  %s11 = inlined_call_operand.hbm [shape: bf16[128,128], index: 11, kind: input, shape index: {}]
  %s12 = inlined_call_operand.vmem [shape: f32[1,128], index: 12, kind: input, shape index: {}]
  %s13 = inlined_call_operand.hbm [shape: bf16[128,128], index: 13, kind: input, shape index: {}]
  %s14 = inlined_call_operand.vmem [shape: f32[1,128], index: 14, kind: input, shape index: {}]
  %s15 = inlined_call_operand.hbm [shape: bf16[128,128], index: 15, kind: input, shape index: {}]
  %s16 = inlined_call_operand.vmem [shape: f32[1,128], index: 16, kind: input, shape index: {}]
  %s17 = inlined_call_operand.vmem [shape: f32[8,128], index: 17, kind: output, shape index: {}]
  %s18 = sld [smem:[#allocation0]]
  $region106: #{mlp_forward.1} parent=0
    _
  %s20 = ssub.s32 1, %s18
  %s21 = scalar_select 0, %s20, %s18
  $region1: #{mlp_forward.1} parent=0
    #allocation2 [shape = 'u8[32768]{0}', space=vmem, size = 0x8000, scoped, tag = 'input window, operand 3, single buffered']
    #allocation3 [shape = 's32[1]{0}', space=sflag, size = 0x4, scoped, tag = 'scoped memory for mlp_forward.1']
    #allocation4 [shape = 'u8[32768]{0}', space=vmem, size = 0x8000, scoped, tag = 'input window, operand 5, single buffered']
    #allocation5 [shape = 's32[1]{0}', space=sflag, size = 0x4, scoped, tag = 'scoped memory for mlp_forward.1']
    #allocation6 [shape = 'u8[32768]{0}', space=vmem, size = 0x8000, scoped, tag = 'input window, operand 7, single buffered']
    #allocation7 [shape = 'u8[32768]{0}', space=vmem, size = 0x8000, scoped, tag = 'input window, operand 9, single buffered']
    #allocation8 [shape = 's32[1]{0}', space=sflag, size = 0x4, scoped, tag = 'scoped memory for mlp_forward.1']
    #allocation9 [shape = 'u8[32768]{0}', space=vmem, size = 0x8000, scoped, tag = 'input window, operand 11, single buffered']
    #allocation10 [shape = 'u8[32768]{0}', space=vmem, size = 0x8000, scoped, tag = 'input window, operand 13, single buffered']
    #allocation11 [shape = 's32[1]{0}', space=sflag, size = 0x4, scoped, tag = 'scoped memory for mlp_forward.1']
    #allocation12 [shape = 'u8[32768]{0}', space=vmem, size = 0x8000, scoped, tag = 'input window, operand 15, single buffered']
    %22 = vsyncpa [#allocation3], 0
    %23 = vsyncpa [#allocation5], 0
    %24 = vsyncpa [#allocation8], 0
    %25 = vsyncpa [#allocation11], 0
    // Predicated region
    $region2: #{mlp_forward.1} parent=1 // pred_check
      _
    $region3: #{mlp_forward.1} parent=1 // pred_check_branch
      %27 = sbr.rel (0) target = $region5
    $region4: #{mlp_forward.1} parent=1 // pred_region
      _
    $region5: #{mlp_forward.1} parent=1 // pred_fallthru
      _
    // Predicated region
    $region6: #{mlp_forward.1} parent=1 // pred_check
      _
    $region7: #{mlp_forward.1} parent=1 // pred_check_branch
      %29 = sbr.rel (0) target = $region9
    $region8: #{mlp_forward.1} parent=1 // pred_region
      _
    $region9: #{mlp_forward.1} parent=1 // pred_fallthru
      _
    // Predicated region
    $region10: #{mlp_forward.1} parent=1 // pred_check
      _
    $region11: #{mlp_forward.1} parent=1 // pred_check_branch
      %31 = sbr.rel (0) target = $region13
    $region12: #{mlp_forward.1} parent=1 // pred_region
      _
    $region13: #{mlp_forward.1} parent=1 // pred_fallthru
      _
    // Predicated region
    $region14: #{mlp_forward.1} parent=1 // pred_check
      _
    $region15: #{mlp_forward.1} parent=1 // pred_check_branch
      %33 = sbr.rel (0) target = $region17
    $region16: #{mlp_forward.1} parent=1 // pred_region
      %s35 = ssub.s32 1024, 1024
      %36 = vsyncadd [#allocation3], %s35
      %s37 = sshll.u32 [#allocation2], 4
      %s38 = int_to_ptr.vmem [resolvable:$true] %s37
      %43 = dma.hbm_to_vmem [thread:$0]  %s3, 1024, %s38, [#allocation3], 64, 64, 4
    $region17: #{mlp_forward.1} parent=1 // pred_fallthru
      _
    // Predicated region
    $region18: #{mlp_forward.1} parent=1 // pred_check
      _
    $region19: #{mlp_forward.1} parent=1 // pred_check_branch
      %45 = sbr.rel (0) target = $region21
    $region20: #{mlp_forward.1} parent=1 // pred_region
      _
    $region21: #{mlp_forward.1} parent=1 // pred_fallthru
      _
    // Predicated region
    $region22: #{mlp_forward.1} parent=1 // pred_check
      _
    $region23: #{mlp_forward.1} parent=1 // pred_check_branch
      %47 = sbr.rel (0) target = $region25
    $region24: #{mlp_forward.1} parent=1 // pred_region
      %s49 = ssub.s32 1024, 1024
      %50 = vsyncadd [#allocation5], %s49
      %s51 = sshll.u32 [#allocation4], 4
      %s52 = int_to_ptr.vmem [resolvable:$true] %s51
      %57 = dma.hbm_to_vmem [thread:$0]  %s5, 1024, %s52, [#allocation5], 64, 64, 4
    $region25: #{mlp_forward.1} parent=1 // pred_fallthru
      _
    // Predicated region
    $region26: #{mlp_forward.1} parent=1 // pred_check
      _
    $region27: #{mlp_forward.1} parent=1 // pred_check_branch
      %59 = sbr.rel (0) target = $region29
    $region28: #{mlp_forward.1} parent=1 // pred_region
      _
    $region29: #{mlp_forward.1} parent=1 // pred_fallthru
      _
    // Predicated region
    $region30: #{mlp_forward.1} parent=1 // pred_check
      _
    $region31: #{mlp_forward.1} parent=1 // pred_check_branch
      %61 = sbr.rel (0) target = $region33
    $region32: #{mlp_forward.1} parent=1 // pred_region
      %s63 = ssub.s32 1024, 1024
      %64 = vsyncadd [#allocation5], %s63
      %s65 = sshll.u32 [#allocation6], 4
      %s66 = int_to_ptr.vmem [resolvable:$true] %s65
      %71 = dma.hbm_to_vmem [thread:$0]  %s7, 1024, %s66, [#allocation5], 64, 64, 4
    $region33: #{mlp_forward.1} parent=1 // pred_fallthru
      _
    // Predicated region
    $region34: #{mlp_forward.1} parent=1 // pred_check
      _
    $region35: #{mlp_forward.1} parent=1 // pred_check_branch
      %73 = sbr.rel (0) target = $region37
    $region36: #{mlp_forward.1} parent=1 // pred_region
      _
    $region37: #{mlp_forward.1} parent=1 // pred_fallthru
      _
    // Predicated region
    $region38: #{mlp_forward.1} parent=1 // pred_check
      _
    $region39: #{mlp_forward.1} parent=1 // pred_check_branch
      %75 = sbr.rel (0) target = $region41
    $region40: #{mlp_forward.1} parent=1 // pred_region
      %s77 = ssub.s32 1024, 1024
      %78 = vsyncadd [#allocation8], %s77
      %s79 = sshll.u32 [#allocation7], 4
      %s80 = int_to_ptr.vmem [resolvable:$true] %s79
      %85 = dma.hbm_to_vmem [thread:$0]  %s9, 1024, %s80, [#allocation8], 64, 64, 4
    $region41: #{mlp_forward.1} parent=1 // pred_fallthru
      _
    // Predicated region
    $region42: #{mlp_forward.1} parent=1 // pred_check
      _
    $region43: #{mlp_forward.1} parent=1 // pred_check_branch
      %87 = sbr.rel (0) target = $region45
    $region44: #{mlp_forward.1} parent=1 // pred_region
      _
    $region45: #{mlp_forward.1} parent=1 // pred_fallthru
      _
    // Predicated region
    $region46: #{mlp_forward.1} parent=1 // pred_check
      _
    $region47: #{mlp_forward.1} parent=1 // pred_check_branch
      %89 = sbr.rel (0) target = $region49
    $region48: #{mlp_forward.1} parent=1 // pred_region
      %s91 = ssub.s32 1024, 1024
      %92 = vsyncadd [#allocation8], %s91
      %s93 = sshll.u32 [#allocation9], 4
      %s94 = int_to_ptr.vmem [resolvable:$true] %s93
      %99 = dma.hbm_to_vmem [thread:$0]  %s11, 1024, %s94, [#allocation8], 64, 64, 4
    $region49: #{mlp_forward.1} parent=1 // pred_fallthru
      _
    // Predicated region
    $region50: #{mlp_forward.1} parent=1 // pred_check
      _
    $region51: #{mlp_forward.1} parent=1 // pred_check_branch
      %101 = sbr.rel (0) target = $region53
    $region52: #{mlp_forward.1} parent=1 // pred_region
      _
    $region53: #{mlp_forward.1} parent=1 // pred_fallthru
      _
    // Predicated region
    $region54: #{mlp_forward.1} parent=1 // pred_check
      _
    $region55: #{mlp_forward.1} parent=1 // pred_check_branch
      %103 = sbr.rel (0) target = $region57
    $region56: #{mlp_forward.1} parent=1 // pred_region
      %s105 = ssub.s32 1024, 1024
      %106 = vsyncadd [#allocation11], %s105
      %s107 = sshll.u32 [#allocation10], 4
      %s108 = int_to_ptr.vmem [resolvable:$true] %s107
      %113 = dma.hbm_to_vmem [thread:$0]  %s13, 1024, %s108, [#allocation11], 64, 64, 4
    $region57: #{mlp_forward.1} parent=1 // pred_fallthru
      _
    // Predicated region
    $region58: #{mlp_forward.1} parent=1 // pred_check
      _
    $region59: #{mlp_forward.1} parent=1 // pred_check_branch
      %115 = sbr.rel (0) target = $region61
    $region60: #{mlp_forward.1} parent=1 // pred_region
      _
    $region61: #{mlp_forward.1} parent=1 // pred_fallthru
      _
    // Predicated region
    $region62: #{mlp_forward.1} parent=1 // pred_check
      _
    $region63: #{mlp_forward.1} parent=1 // pred_check_branch
      %117 = sbr.rel (0) target = $region65
    $region64: #{mlp_forward.1} parent=1 // pred_region
      %s119 = ssub.s32 1024, 1024
      %120 = vsyncadd [#allocation11], %s119
      %s121 = sshll.u32 [#allocation12], 4
      %s122 = int_to_ptr.vmem [resolvable:$true] %s121
      %127 = dma.hbm_to_vmem [thread:$0]  %s15, 1024, %s122, [#allocation11], 64, 64, 4
    $region65: #{mlp_forward.1} parent=1 // pred_fallthru
      _
    // Predicated region
    $region66: #{mlp_forward.1} parent=1 // pred_check
      _
    $region67: #{mlp_forward.1} parent=1 // pred_check_branch
      %129 = sbr.rel (0) target = $region69
    $region68: #{mlp_forward.1} parent=1 // pred_region
      _
    $region69: #{mlp_forward.1} parent=1 // pred_fallthru
      _
    // Predicated region
    $region70: #{mlp_forward.1} parent=1 // pred_check
      _
    $region71: #{mlp_forward.1} parent=1 // pred_check_branch
      %131 = sbr.rel (0) target = $region73
    $region72: #{mlp_forward.1} parent=1 // pred_region
      %132 = dma.done [#allocation3], 1024
    $region73: #{mlp_forward.1} parent=1 // pred_fallthru
      _
    // Predicated region
    $region74: #{mlp_forward.1} parent=1 // pred_check
      _
    $region75: #{mlp_forward.1} parent=1 // pred_check_branch
      %134 = sbr.rel (0) target = $region77
    $region76: #{mlp_forward.1} parent=1 // pred_region
      %135 = dma.done [#allocation5], 1024
    $region77: #{mlp_forward.1} parent=1 // pred_fallthru
      _
    // Predicated region
    $region78: #{mlp_forward.1} parent=1 // pred_check
      _
    $region79: #{mlp_forward.1} parent=1 // pred_check_branch
      %137 = sbr.rel (0) target = $region81
    $region80: #{mlp_forward.1} parent=1 // pred_region
      %138 = dma.done [#allocation5], 1024
    $region81: #{mlp_forward.1} parent=1 // pred_fallthru
      _
    // Predicated region
    $region82: #{mlp_forward.1} parent=1 // pred_check
      _
    $region83: #{mlp_forward.1} parent=1 // pred_check_branch
      %140 = sbr.rel (0) target = $region85
    $region84: #{mlp_forward.1} parent=1 // pred_region
      %141 = dma.done [#allocation8], 1024
    $region85: #{mlp_forward.1} parent=1 // pred_fallthru
      _
    // Predicated region
    $region86: #{mlp_forward.1} parent=1 // pred_check
      _
    $region87: #{mlp_forward.1} parent=1 // pred_check_branch
      %143 = sbr.rel (0) target = $region89
    $region88: #{mlp_forward.1} parent=1 // pred_region
      %144 = dma.done [#allocation8], 1024
    $region89: #{mlp_forward.1} parent=1 // pred_fallthru
      _
    // Predicated region
    $region90: #{mlp_forward.1} parent=1 // pred_check
      _
    $region91: #{mlp_forward.1} parent=1 // pred_check_branch
      %146 = sbr.rel (0) target = $region93
    $region92: #{mlp_forward.1} parent=1 // pred_region
      %147 = dma.done [#allocation11], 1024
    $region93: #{mlp_forward.1} parent=1 // pred_fallthru
      _
    // Predicated region
    $region94: #{mlp_forward.1} parent=1 // pred_check
      _
    $region95: #{mlp_forward.1} parent=1 // pred_check_branch
      %149 = sbr.rel (0) target = $region97
    $region96: #{mlp_forward.1} parent=1 // pred_region
      %150 = dma.done [#allocation11], 1024
    $region97: #{mlp_forward.1} parent=1 // pred_fallthru
      _
    %v152 = vld [vmem:[%s0] sm:$0xff]
    %v153 = vld [vmem:[%s1] sm:$0xf]
    %v154 = vld [vmem:[%s1 + $0x4] sm:$0xf]
    %v155 = vld [vmem:[%s1 + $0x8] sm:$0xf]
    %v156 = vld [vmem:[%s1 + $0xc] sm:$0xf]
    %v157 = vld [vmem:[%s1 + $0x10] sm:$0xf]
    %v158 = vld [vmem:[%s1 + $0x14] sm:$0xf]
    %v159 = vld [vmem:[%s1 + $0x18] sm:$0xf]
    %v160 = vld [vmem:[%s1 + $0x1c] sm:$0xf]
    %v161 = vld [vmem:[%s1 + $0x20] sm:$0xf]
    %v162 = vld [vmem:[%s1 + $0x24] sm:$0xf]
    %v163 = vld [vmem:[%s1 + $0x28] sm:$0xf]
    %v164 = vld [vmem:[%s1 + $0x2c] sm:$0xf]
    %v165 = vld [vmem:[%s1 + $0x30] sm:$0xf]
    %v166 = vld [vmem:[%s1 + $0x34] sm:$0xf]
    %v167 = vld [vmem:[%s1 + $0x38] sm:$0xf]
    %v168 = vld [vmem:[%s1 + $0x3c] sm:$0xf]
    %v169 = vld [vmem:[%s1 + $0x40] sm:$0xf]
    %v170 = vld [vmem:[%s1 + $0x44] sm:$0xf]
    %v171 = vld [vmem:[%s1 + $0x48] sm:$0xf]
    %v172 = vld [vmem:[%s1 + $0x4c] sm:$0xf]
    %v173 = vld [vmem:[%s1 + $0x50] sm:$0xf]
    %v174 = vld [vmem:[%s1 + $0x54] sm:$0xf]
    %v175 = vld [vmem:[%s1 + $0x58] sm:$0xf]
    %v176 = vld [vmem:[%s1 + $0x5c] sm:$0xf]
    %v177 = vld [vmem:[%s1 + $0x60] sm:$0xf]
    %v178 = vld [vmem:[%s1 + $0x64] sm:$0xf]
    %v179 = vld [vmem:[%s1 + $0x68] sm:$0xf]
    %v180 = vld [vmem:[%s1 + $0x6c] sm:$0xf]
    %v181 = vld [vmem:[%s1 + $0x70] sm:$0xf]
    %v182 = vld [vmem:[%s1 + $0x74] sm:$0xf]
    %v183 = vld [vmem:[%s1 + $0x78] sm:$0xf]
    %v184 = vld [vmem:[%s1 + $0x7c] sm:$0xf]
    %v185 = vld [vmem:[%s2] sm:$0x1]
    %v187 = vlaneseq
    %v188 = vshrl.u32 %v187, 7
    %v189 = vsub.s32 0, %v188
    %v190 = vrot.slane %v185, %v189
    %v193 = vunpack.c.l.b16 %v152
    %v194 = vunpack.c.h.b16 %v152
    %v195 = vpack.c.b16 %v193, %v193
    %v196 = vpack.c.b16 %v194, %v194
    %v231 = vunpack.c.l.b16 %v153
    %v232 = vunpack.c.l.b16 %v154
    %v233 = vunpack.c.l.b16 %v155
    %v234 = vunpack.c.l.b16 %v156
    %v235 = vunpack.c.l.b16 %v157
    %v236 = vunpack.c.l.b16 %v158
    %v237 = vunpack.c.l.b16 %v159
    %v238 = vunpack.c.l.b16 %v160
    %v239 = vunpack.c.l.b16 %v161
    %v240 = vunpack.c.l.b16 %v162
    %v241 = vunpack.c.l.b16 %v163
    %v242 = vunpack.c.l.b16 %v164
    %v243 = vunpack.c.l.b16 %v165
    %v244 = vunpack.c.l.b16 %v166
    %v245 = vunpack.c.l.b16 %v167
    %v246 = vunpack.c.l.b16 %v168
    %v247 = vunpack.c.l.b16 %v169
    %v248 = vunpack.c.l.b16 %v170
    %v249 = vunpack.c.l.b16 %v171
    %v250 = vunpack.c.l.b16 %v172
    %v251 = vunpack.c.l.b16 %v173
    %v252 = vunpack.c.l.b16 %v174
    %v253 = vunpack.c.l.b16 %v175
    %v254 = vunpack.c.l.b16 %v176
    %v255 = vunpack.c.l.b16 %v177
    %v256 = vunpack.c.l.b16 %v178
    %v257 = vunpack.c.l.b16 %v179
    %v258 = vunpack.c.l.b16 %v180
    %v259 = vunpack.c.l.b16 %v181
    %v260 = vunpack.c.l.b16 %v182
    %v261 = vunpack.c.l.b16 %v183
    %v262 = vunpack.c.l.b16 %v184
    %v263 = vpack.c.b16 %v232, %v231
    %v264 = vpack.c.b16 %v234, %v233
    %v265 = vpack.c.b16 %v236, %v235
    %v266 = vpack.c.b16 %v238, %v237
    %v267 = vpack.c.b16 %v240, %v239
    %v268 = vpack.c.b16 %v242, %v241
    %v269 = vpack.c.b16 %v244, %v243
    %v270 = vpack.c.b16 %v246, %v245
    %v271 = vpack.c.b16 %v248, %v247
    %v272 = vpack.c.b16 %v250, %v249
    %v273 = vpack.c.b16 %v252, %v251
    %v274 = vpack.c.b16 %v254, %v253
    %v275 = vpack.c.b16 %v256, %v255
    %v276 = vpack.c.b16 %v258, %v257
    %v277 = vpack.c.b16 %v260, %v259
    %v278 = vpack.c.b16 %v262, %v261
    %295 = vmatprep.subr.bf16.mxu0 0
    %296 = vmatpush1.bf16.msra.mxu0 %v270
    %297 = vmatprep.subr.bf16.mxu0 0
    %298 = vmatpush1.bf16.msra.mxu0 %v269
    %299 = vmatprep.subr.bf16.mxu0 0
    %300 = vmatpush1.bf16.msra.mxu0 %v268
    %301 = vmatprep.subr.bf16.mxu0 0
    %302 = vmatpush1.bf16.msra.mxu0 %v267
    %303 = vmatprep.subr.bf16.mxu0 0
    %304 = vmatpush1.bf16.msra.mxu0 %v266
    %305 = vmatprep.subr.bf16.mxu0 0
    %306 = vmatpush1.bf16.msra.mxu0 %v265
    %307 = vmatprep.subr.bf16.mxu0 0
    %308 = vmatpush1.bf16.msra.mxu0 %v264
    %309 = vmatprep.subr.bf16.mxu0 0
    %310 = vmatpush1.bf16.msra.mxu0 %v263
    %311 = vmatprep.subr.bf16.mxu0 0
    %312 = vmatpush2.bf16.msra.mxu0 %v278
    %313 = vmatprep.subr.bf16.mxu0 0
    %314 = vmatpush2.bf16.msra.mxu0 %v277
    %315 = vmatprep.subr.bf16.mxu0 0
    %316 = vmatpush2.bf16.msra.mxu0 %v276
    %317 = vmatprep.subr.bf16.mxu0 0
    %318 = vmatpush2.bf16.msra.mxu0 %v275
    %319 = vmatprep.subr.bf16.mxu0 0
    %320 = vmatpush2.bf16.msra.mxu0 %v274
    %321 = vmatprep.subr.bf16.mxu0 0
    %322 = vmatpush2.bf16.msra.mxu0 %v273
    %323 = vmatprep.subr.bf16.mxu0 0
    %324 = vmatpush2.bf16.msra.mxu0 %v272
    %325 = vmatprep.subr.bf16.mxu0 0
    %326 = vmatpush2.bf16.msra.mxu0 %v271
    %327 = vmatprep.mubr.bf16.mxu0 %v196
    %328 = vmatmul.mubr.bf16.gmra.mxu0 %v195
    %v329 = vpop.f32.mrf.mxu0
    %v330 = vadd.f32 %v190, %v329
    %v331 = vpop.f32.mrf.mxu0
    %v332 = vpop.f32.mrf.mxu0
    %v333 = vpop.f32.mrf.mxu0
    %334 = vdwg.mxu0
    %v335 = vsub.f32 0.0, %v330
    %v336 = vmul.f32 %v335, 1.442695
    %v337 = vpow.pop %v336
    %v338 = vadd.f32 %v337, 1.0
    %v339 = vrcp.pop %v338
    %v340 = vmul.f32 %v330, %v339
    %v341 = vpack.c.bf16 %v340, %v340
    %v342 = vld [vmem:[#allocation2] sm:$0xf]
    %v343 = vld [vmem:[#allocation2 + $0x4] sm:$0xf]
    %v344 = vld [vmem:[#allocation2 + $0x8] sm:$0xf]
    %v345 = vld [vmem:[#allocation2 + $0xc] sm:$0xf]
    %v346 = vld [vmem:[#allocation2 + $0x10] sm:$0xf]
    %v347 = vld [vmem:[#allocation2 + $0x14] sm:$0xf]
    %v348 = vld [vmem:[#allocation2 + $0x18] sm:$0xf]
    %v349 = vld [vmem:[#allocation2 + $0x1c] sm:$0xf]
    %v350 = vld [vmem:[#allocation2 + $0x20] sm:$0xf]
    %v351 = vld [vmem:[#allocation2 + $0x24] sm:$0xf]
    %v352 = vld [vmem:[#allocation2 + $0x28] sm:$0xf]
    %v353 = vld [vmem:[#allocation2 + $0x2c] sm:$0xf]
    %v354 = vld [vmem:[#allocation2 + $0x30] sm:$0xf]
    %v355 = vld [vmem:[#allocation2 + $0x34] sm:$0xf]
    %v356 = vld [vmem:[#allocation2 + $0x38] sm:$0xf]
    %v357 = vld [vmem:[#allocation2 + $0x3c] sm:$0xf]
    %v358 = vld [vmem:[%s4] sm:$0x1]
    %v360 = vlaneseq
    %v361 = vshrl.u32 %v360, 7
    %v362 = vsub.s32 0, %v361
    %v363 = vrot.slane %v358, %v362
    %v381 = vunpack.c.l.b16 %v342
    %v382 = vunpack.c.l.b16 %v343
    %v383 = vunpack.c.l.b16 %v344
    %v384 = vunpack.c.l.b16 %v345
    %v385 = vunpack.c.l.b16 %v346
    %v386 = vunpack.c.l.b16 %v347
    %v387 = vunpack.c.l.b16 %v348
    %v388 = vunpack.c.l.b16 %v349
    %v389 = vunpack.c.l.b16 %v350
    %v390 = vunpack.c.l.b16 %v351
    %v391 = vunpack.c.l.b16 %v352
    %v392 = vunpack.c.l.b16 %v353
    %v393 = vunpack.c.l.b16 %v354
    %v394 = vunpack.c.l.b16 %v355
    %v395 = vunpack.c.l.b16 %v356
    %v396 = vunpack.c.l.b16 %v357
    %v397 = vpack.c.b16 %v382, %v381
    %v398 = vpack.c.b16 %v384, %v383
    %v399 = vpack.c.b16 %v386, %v385
    %v400 = vpack.c.b16 %v388, %v387
    %v401 = vpack.c.b16 %v390, %v389
    %v402 = vpack.c.b16 %v392, %v391
    %v403 = vpack.c.b16 %v394, %v393
    %v404 = vpack.c.b16 %v396, %v395
    %413 = vmatprep.subr.bf16.mxu0 0
    %414 = vmatpush1.bf16.msra.mxu0 %v404
    %415 = vmatprep.subr.bf16.mxu0 0
    %416 = vmatpush1.bf16.msra.mxu0 %v403
    %417 = vmatprep.subr.bf16.mxu0 0
    %418 = vmatpush1.bf16.msra.mxu0 %v402
    %419 = vmatprep.subr.bf16.mxu0 0
    %420 = vmatpush1.bf16.msra.mxu0 %v401
    %421 = vmatprep.subr.bf16.mxu0 0
    %422 = vmatpush1.bf16.msra.mxu0 %v400
    %423 = vmatprep.subr.bf16.mxu0 0
    %424 = vmatpush1.bf16.msra.mxu0 %v399
    %425 = vmatprep.subr.bf16.mxu0 0
    %426 = vmatpush1.bf16.msra.mxu0 %v398
    %427 = vmatprep.subr.bf16.mxu0 0
    %428 = vmatpush1.bf16.msra.mxu0 %v397
    %429 = vmatprep.subr.bf16.mxu0 0
    %430 = vmatpush2.bf16.msra.mxu0 0
    %431 = vmatprep.subr.bf16.mxu0 0
    %432 = vmatpush2.bf16.msra.mxu0 0
    %433 = vmatprep.subr.bf16.mxu0 0
    %434 = vmatpush2.bf16.msra.mxu0 0
    %435 = vmatprep.subr.bf16.mxu0 0
    %436 = vmatpush2.bf16.msra.mxu0 0
    %437 = vmatprep.subr.bf16.mxu0 0
    %438 = vmatpush2.bf16.msra.mxu0 0
    %439 = vmatprep.subr.bf16.mxu0 0
    %440 = vmatpush2.bf16.msra.mxu0 0
    %441 = vmatprep.subr.bf16.mxu0 0
    %442 = vmatpush2.bf16.msra.mxu0 0
    %443 = vmatprep.subr.bf16.mxu0 0
    %444 = vmatpush2.bf16.msra.mxu0 0
    %445 = vmatprep.mubr.bf16.mxu0 0
    %446 = vmatmul.mubr.bf16.gmra.mxu0 %v341
    %v447 = vpop.f32.mrf.mxu0
    %v448 = vadd.f32 %v363, %v447
    %v449 = vpop.f32.mrf.mxu0
    %v450 = vpop.f32.mrf.mxu0
    %v451 = vpop.f32.mrf.mxu0
    %452 = vdwg.mxu0
    %v453 = vsub.f32 0.0, %v448
    %v454 = vmul.f32 %v453, 1.442695
    %v455 = vpow.pop %v454
    %v456 = vadd.f32 %v455, 1.0
    %v457 = vrcp.pop %v456
    %v458 = vmul.f32 %v448, %v457
    %v459 = vpack.c.bf16 %v458, %v458
    %v460 = vld [vmem:[#allocation4] sm:$0xf]
    %v461 = vld [vmem:[#allocation4 + $0x4] sm:$0xf]
    %v462 = vld [vmem:[#allocation4 + $0x8] sm:$0xf]
    %v463 = vld [vmem:[#allocation4 + $0xc] sm:$0xf]
    %v464 = vld [vmem:[#allocation4 + $0x10] sm:$0xf]
    %v465 = vld [vmem:[#allocation4 + $0x14] sm:$0xf]
    %v466 = vld [vmem:[#allocation4 + $0x18] sm:$0xf]
    %v467 = vld [vmem:[#allocation4 + $0x1c] sm:$0xf]
    %v468 = vld [vmem:[#allocation4 + $0x20] sm:$0xf]
    %v469 = vld [vmem:[#allocation4 + $0x24] sm:$0xf]
    %v470 = vld [vmem:[#allocation4 + $0x28] sm:$0xf]
    %v471 = vld [vmem:[#allocation4 + $0x2c] sm:$0xf]
    %v472 = vld [vmem:[#allocation4 + $0x30] sm:$0xf]
    %v473 = vld [vmem:[#allocation4 + $0x34] sm:$0xf]
    %v474 = vld [vmem:[#allocation4 + $0x38] sm:$0xf]
    %v475 = vld [vmem:[#allocation4 + $0x3c] sm:$0xf]
    %v476 = vld [vmem:[%s6] sm:$0x1]
    %v478 = vlaneseq
    %v479 = vshrl.u32 %v478, 7
    %v480 = vsub.s32 0, %v479
    %v481 = vrot.slane %v476, %v480
    %v499 = vunpack.c.l.b16 %v460
    %v500 = vunpack.c.l.b16 %v461
    %v501 = vunpack.c.l.b16 %v462
    %v502 = vunpack.c.l.b16 %v463
    %v503 = vunpack.c.l.b16 %v464
    %v504 = vunpack.c.l.b16 %v465
    %v505 = vunpack.c.l.b16 %v466
    %v506 = vunpack.c.l.b16 %v467
    %v507 = vunpack.c.l.b16 %v468
    %v508 = vunpack.c.l.b16 %v469
    %v509 = vunpack.c.l.b16 %v470
    %v510 = vunpack.c.l.b16 %v471
    %v511 = vunpack.c.l.b16 %v472
    %v512 = vunpack.c.l.b16 %v473
    %v513 = vunpack.c.l.b16 %v474
    %v514 = vunpack.c.l.b16 %v475
    %v515 = vpack.c.b16 %v500, %v499
    %v516 = vpack.c.b16 %v502, %v501
    %v517 = vpack.c.b16 %v504, %v503
    %v518 = vpack.c.b16 %v506, %v505
    %v519 = vpack.c.b16 %v508, %v507
    %v520 = vpack.c.b16 %v510, %v509
    %v521 = vpack.c.b16 %v512, %v511
    %v522 = vpack.c.b16 %v514, %v513
    %531 = vmatprep.subr.bf16.mxu0 0
    %532 = vmatpush1.bf16.msra.mxu0 %v522
    %533 = vmatprep.subr.bf16.mxu0 0
    %534 = vmatpush1.bf16.msra.mxu0 %v521
    %535 = vmatprep.subr.bf16.mxu0 0
    %536 = vmatpush1.bf16.msra.mxu0 %v520
    %537 = vmatprep.subr.bf16.mxu0 0
    %538 = vmatpush1.bf16.msra.mxu0 %v519
    %539 = vmatprep.subr.bf16.mxu0 0
    %540 = vmatpush1.bf16.msra.mxu0 %v518
    %541 = vmatprep.subr.bf16.mxu0 0
    %542 = vmatpush1.bf16.msra.mxu0 %v517
    %543 = vmatprep.subr.bf16.mxu0 0
    %544 = vmatpush1.bf16.msra.mxu0 %v516
    %545 = vmatprep.subr.bf16.mxu0 0
    %546 = vmatpush1.bf16.msra.mxu0 %v515
    %547 = vmatprep.subr.bf16.mxu0 0
    %548 = vmatpush2.bf16.msra.mxu0 0
    %549 = vmatprep.subr.bf16.mxu0 0
    %550 = vmatpush2.bf16.msra.mxu0 0
    %551 = vmatprep.subr.bf16.mxu0 0
    %552 = vmatpush2.bf16.msra.mxu0 0
    %553 = vmatprep.subr.bf16.mxu0 0
    %554 = vmatpush2.bf16.msra.mxu0 0
    %555 = vmatprep.subr.bf16.mxu0 0
    %556 = vmatpush2.bf16.msra.mxu0 0
    %557 = vmatprep.subr.bf16.mxu0 0
    %558 = vmatpush2.bf16.msra.mxu0 0
    %559 = vmatprep.subr.bf16.mxu0 0
    %560 = vmatpush2.bf16.msra.mxu0 0
    %561 = vmatprep.subr.bf16.mxu0 0
    %562 = vmatpush2.bf16.msra.mxu0 0
    %563 = vmatprep.mubr.bf16.mxu0 0
    %564 = vmatmul.mubr.bf16.gmra.mxu0 %v459
    %v565 = vpop.f32.mrf.mxu0
    %v566 = vadd.f32 %v481, %v565
    %v567 = vpop.f32.mrf.mxu0
    %v568 = vpop.f32.mrf.mxu0
    %v569 = vpop.f32.mrf.mxu0
    %570 = vdwg.mxu0
    %v571 = vsub.f32 0.0, %v566
    %v572 = vmul.f32 %v571, 1.442695
    %v573 = vpow.pop %v572
    %v574 = vadd.f32 %v573, 1.0
    %v575 = vrcp.pop %v574
    %v576 = vmul.f32 %v566, %v575
    %v577 = vpack.c.bf16 %v576, %v576
    %v578 = vld [vmem:[#allocation6] sm:$0xf]
    %v579 = vld [vmem:[#allocation6 + $0x4] sm:$0xf]
    %v580 = vld [vmem:[#allocation6 + $0x8] sm:$0xf]
    %v581 = vld [vmem:[#allocation6 + $0xc] sm:$0xf]
    %v582 = vld [vmem:[#allocation6 + $0x10] sm:$0xf]
    %v583 = vld [vmem:[#allocation6 + $0x14] sm:$0xf]
    %v584 = vld [vmem:[#allocation6 + $0x18] sm:$0xf]
    %v585 = vld [vmem:[#allocation6 + $0x1c] sm:$0xf]
    %v586 = vld [vmem:[#allocation6 + $0x20] sm:$0xf]
    %v587 = vld [vmem:[#allocation6 + $0x24] sm:$0xf]
    %v588 = vld [vmem:[#allocation6 + $0x28] sm:$0xf]
    %v589 = vld [vmem:[#allocation6 + $0x2c] sm:$0xf]
    %v590 = vld [vmem:[#allocation6 + $0x30] sm:$0xf]
    %v591 = vld [vmem:[#allocation6 + $0x34] sm:$0xf]
    %v592 = vld [vmem:[#allocation6 + $0x38] sm:$0xf]
    %v593 = vld [vmem:[#allocation6 + $0x3c] sm:$0xf]
    %v594 = vld [vmem:[%s8] sm:$0x1]
    %v596 = vlaneseq
    %v597 = vshrl.u32 %v596, 7
    %v598 = vsub.s32 0, %v597
    %v599 = vrot.slane %v594, %v598
    %v617 = vunpack.c.l.b16 %v578
    %v618 = vunpack.c.l.b16 %v579
    %v619 = vunpack.c.l.b16 %v580
    %v620 = vunpack.c.l.b16 %v581
    %v621 = vunpack.c.l.b16 %v582
    %v622 = vunpack.c.l.b16 %v583
    %v623 = vunpack.c.l.b16 %v584
    %v624 = vunpack.c.l.b16 %v585
    %v625 = vunpack.c.l.b16 %v586
    %v626 = vunpack.c.l.b16 %v587
    %v627 = vunpack.c.l.b16 %v588
    %v628 = vunpack.c.l.b16 %v589
    %v629 = vunpack.c.l.b16 %v590
    %v630 = vunpack.c.l.b16 %v591
    %v631 = vunpack.c.l.b16 %v592
    %v632 = vunpack.c.l.b16 %v593
    %v633 = vpack.c.b16 %v618, %v617
    %v634 = vpack.c.b16 %v620, %v619
    %v635 = vpack.c.b16 %v622, %v621
    %v636 = vpack.c.b16 %v624, %v623
    %v637 = vpack.c.b16 %v626, %v625
    %v638 = vpack.c.b16 %v628, %v627
    %v639 = vpack.c.b16 %v630, %v629
    %v640 = vpack.c.b16 %v632, %v631
    %649 = vmatprep.subr.bf16.mxu0 0
    %650 = vmatpush1.bf16.msra.mxu0 %v640
    %651 = vmatprep.subr.bf16.mxu0 0
    %652 = vmatpush1.bf16.msra.mxu0 %v639
    %653 = vmatprep.subr.bf16.mxu0 0
    %654 = vmatpush1.bf16.msra.mxu0 %v638
    %655 = vmatprep.subr.bf16.mxu0 0
    %656 = vmatpush1.bf16.msra.mxu0 %v637
    %657 = vmatprep.subr.bf16.mxu0 0
    %658 = vmatpush1.bf16.msra.mxu0 %v636
    %659 = vmatprep.subr.bf16.mxu0 0
    %660 = vmatpush1.bf16.msra.mxu0 %v635
    %661 = vmatprep.subr.bf16.mxu0 0
    %662 = vmatpush1.bf16.msra.mxu0 %v634
    %663 = vmatprep.subr.bf16.mxu0 0
    %664 = vmatpush1.bf16.msra.mxu0 %v633
    %665 = vmatprep.subr.bf16.mxu0 0
    %666 = vmatpush2.bf16.msra.mxu0 0
    %667 = vmatprep.subr.bf16.mxu0 0
    %668 = vmatpush2.bf16.msra.mxu0 0
    %669 = vmatprep.subr.bf16.mxu0 0
    %670 = vmatpush2.bf16.msra.mxu0 0
    %671 = vmatprep.subr.bf16.mxu0 0
    %672 = vmatpush2.bf16.msra.mxu0 0
    %673 = vmatprep.subr.bf16.mxu0 0
    %674 = vmatpush2.bf16.msra.mxu0 0
    %675 = vmatprep.subr.bf16.mxu0 0
    %676 = vmatpush2.bf16.msra.mxu0 0
    %677 = vmatprep.subr.bf16.mxu0 0
    %678 = vmatpush2.bf16.msra.mxu0 0
    %679 = vmatprep.subr.bf16.mxu0 0
    %680 = vmatpush2.bf16.msra.mxu0 0
    %681 = vmatprep.mubr.bf16.mxu0 0
    %682 = vmatmul.mubr.bf16.gmra.mxu0 %v577
    %v683 = vpop.f32.mrf.mxu0
    %v684 = vadd.f32 %v599, %v683
    %v685 = vpop.f32.mrf.mxu0
    %v686 = vpop.f32.mrf.mxu0
    %v687 = vpop.f32.mrf.mxu0
    %688 = vdwg.mxu0
    %v689 = vsub.f32 0.0, %v684
    %v690 = vmul.f32 %v689, 1.442695
    %v691 = vpow.pop %v690
    %v692 = vadd.f32 %v691, 1.0
    %v693 = vrcp.pop %v692
    %v694 = vmul.f32 %v684, %v693
    %v695 = vpack.c.bf16 %v694, %v694
    %v696 = vld [vmem:[#allocation7] sm:$0xf]
    %v697 = vld [vmem:[#allocation7 + $0x4] sm:$0xf]
    %v698 = vld [vmem:[#allocation7 + $0x8] sm:$0xf]
    %v699 = vld [vmem:[#allocation7 + $0xc] sm:$0xf]
    %v700 = vld [vmem:[#allocation7 + $0x10] sm:$0xf]
    %v701 = vld [vmem:[#allocation7 + $0x14] sm:$0xf]
    %v702 = vld [vmem:[#allocation7 + $0x18] sm:$0xf]
    %v703 = vld [vmem:[#allocation7 + $0x1c] sm:$0xf]
    %v704 = vld [vmem:[#allocation7 + $0x20] sm:$0xf]
    %v705 = vld [vmem:[#allocation7 + $0x24] sm:$0xf]
    %v706 = vld [vmem:[#allocation7 + $0x28] sm:$0xf]
    %v707 = vld [vmem:[#allocation7 + $0x2c] sm:$0xf]
    %v708 = vld [vmem:[#allocation7 + $0x30] sm:$0xf]
    %v709 = vld [vmem:[#allocation7 + $0x34] sm:$0xf]
    %v710 = vld [vmem:[#allocation7 + $0x38] sm:$0xf]
    %v711 = vld [vmem:[#allocation7 + $0x3c] sm:$0xf]
    %v712 = vld [vmem:[%s10] sm:$0x1]
    %v714 = vlaneseq
    %v715 = vshrl.u32 %v714, 7
    %v716 = vsub.s32 0, %v715
    %v717 = vrot.slane %v712, %v716
    %v735 = vunpack.c.l.b16 %v696
    %v736 = vunpack.c.l.b16 %v697
    %v737 = vunpack.c.l.b16 %v698
    %v738 = vunpack.c.l.b16 %v699
    %v739 = vunpack.c.l.b16 %v700
    %v740 = vunpack.c.l.b16 %v701
    %v741 = vunpack.c.l.b16 %v702
    %v742 = vunpack.c.l.b16 %v703
    %v743 = vunpack.c.l.b16 %v704
    %v744 = vunpack.c.l.b16 %v705
    %v745 = vunpack.c.l.b16 %v706
    %v746 = vunpack.c.l.b16 %v707
    %v747 = vunpack.c.l.b16 %v708
    %v748 = vunpack.c.l.b16 %v709
    %v749 = vunpack.c.l.b16 %v710
    %v750 = vunpack.c.l.b16 %v711
    %v751 = vpack.c.b16 %v736, %v735
    %v752 = vpack.c.b16 %v738, %v737
    %v753 = vpack.c.b16 %v740, %v739
    %v754 = vpack.c.b16 %v742, %v741
    %v755 = vpack.c.b16 %v744, %v743
    %v756 = vpack.c.b16 %v746, %v745
    %v757 = vpack.c.b16 %v748, %v747
    %v758 = vpack.c.b16 %v750, %v749
    %767 = vmatprep.subr.bf16.mxu0 0
    %768 = vmatpush1.bf16.msra.mxu0 %v758
    %769 = vmatprep.subr.bf16.mxu0 0
    %770 = vmatpush1.bf16.msra.mxu0 %v757
    %771 = vmatprep.subr.bf16.mxu0 0
    %772 = vmatpush1.bf16.msra.mxu0 %v756
    %773 = vmatprep.subr.bf16.mxu0 0
    %774 = vmatpush1.bf16.msra.mxu0 %v755
    %775 = vmatprep.subr.bf16.mxu0 0
    %776 = vmatpush1.bf16.msra.mxu0 %v754
    %777 = vmatprep.subr.bf16.mxu0 0
    %778 = vmatpush1.bf16.msra.mxu0 %v753
    %779 = vmatprep.subr.bf16.mxu0 0
    %780 = vmatpush1.bf16.msra.mxu0 %v752
    %781 = vmatprep.subr.bf16.mxu0 0
    %782 = vmatpush1.bf16.msra.mxu0 %v751
    %783 = vmatprep.subr.bf16.mxu0 0
    %784 = vmatpush2.bf16.msra.mxu0 0
    %785 = vmatprep.subr.bf16.mxu0 0
    %786 = vmatpush2.bf16.msra.mxu0 0
    %787 = vmatprep.subr.bf16.mxu0 0
    %788 = vmatpush2.bf16.msra.mxu0 0
    %789 = vmatprep.subr.bf16.mxu0 0
    %790 = vmatpush2.bf16.msra.mxu0 0
    %791 = vmatprep.subr.bf16.mxu0 0
    %792 = vmatpush2.bf16.msra.mxu0 0
    %793 = vmatprep.subr.bf16.mxu0 0
    %794 = vmatpush2.bf16.msra.mxu0 0
    %795 = vmatprep.subr.bf16.mxu0 0
    %796 = vmatpush2.bf16.msra.mxu0 0
    %797 = vmatprep.subr.bf16.mxu0 0
    %798 = vmatpush2.bf16.msra.mxu0 0
    %799 = vmatprep.mubr.bf16.mxu0 0
    %800 = vmatmul.mubr.bf16.gmra.mxu0 %v695
    %v801 = vpop.f32.mrf.mxu0
    %v802 = vadd.f32 %v717, %v801
    %v803 = vpop.f32.mrf.mxu0
    %v804 = vpop.f32.mrf.mxu0
    %v805 = vpop.f32.mrf.mxu0
    %806 = vdwg.mxu0
    %v807 = vsub.f32 0.0, %v802
    %v808 = vmul.f32 %v807, 1.442695
    %v809 = vpow.pop %v808
    %v810 = vadd.f32 %v809, 1.0
    %v811 = vrcp.pop %v810
    %v812 = vmul.f32 %v802, %v811
    %v813 = vpack.c.bf16 %v812, %v812
    %v814 = vlaneseq
    %v815 = vand.u32 %v814, 127
    %vm816 = vcmp.lt.s32.totalorder %v815, 64
    %v817 = vld [vmem:[#allocation9] sm:$0xf]
    %v818 = vld [vmem:[#allocation9 + $0x4] sm:$0xf]
    %v819 = vld [vmem:[#allocation9 + $0x8] sm:$0xf]
    %v820 = vld [vmem:[#allocation9 + $0xc] sm:$0xf]
    %v821 = vld [vmem:[#allocation9 + $0x10] sm:$0xf]
    %v822 = vld [vmem:[#allocation9 + $0x14] sm:$0xf]
    %v823 = vld [vmem:[#allocation9 + $0x18] sm:$0xf]
    %v824 = vld [vmem:[#allocation9 + $0x1c] sm:$0xf]
    %v825 = vld [vmem:[#allocation9 + $0x20] sm:$0xf]
    %v826 = vld [vmem:[#allocation9 + $0x24] sm:$0xf]
    %v827 = vld [vmem:[#allocation9 + $0x28] sm:$0xf]
    %v828 = vld [vmem:[#allocation9 + $0x2c] sm:$0xf]
    %v829 = vld [vmem:[#allocation9 + $0x30] sm:$0xf]
    %v830 = vld [vmem:[#allocation9 + $0x34] sm:$0xf]
    %v831 = vld [vmem:[#allocation9 + $0x38] sm:$0xf]
    %v832 = vld [vmem:[#allocation9 + $0x3c] sm:$0xf]
    %v833 = vld [vmem:[%s12] sm:$0x1]
    %v835 = vlaneseq
    %v836 = vshrl.u32 %v835, 7
    %v837 = vsub.s32 0, %v836
    %v838 = vrot.slane %v833, %v837
    %v856 = vunpack.c.l.b16 %v817
    %v857 = vunpack.c.l.b16 %v818
    %v858 = vunpack.c.l.b16 %v819
    %v859 = vunpack.c.l.b16 %v820
    %v860 = vunpack.c.l.b16 %v821
    %v861 = vunpack.c.l.b16 %v822
    %v862 = vunpack.c.l.b16 %v823
    %v863 = vunpack.c.l.b16 %v824
    %v864 = vunpack.c.l.b16 %v825
    %v865 = vunpack.c.l.b16 %v826
    %v866 = vunpack.c.l.b16 %v827
    %v867 = vunpack.c.l.b16 %v828
    %v868 = vunpack.c.l.b16 %v829
    %v869 = vunpack.c.l.b16 %v830
    %v870 = vunpack.c.l.b16 %v831
    %v871 = vunpack.c.l.b16 %v832
    %v872 = vpack.c.b16 %v857, %v856
    %v873 = vpack.c.b16 %v859, %v858
    %v874 = vpack.c.b16 %v861, %v860
    %v875 = vpack.c.b16 %v863, %v862
    %v876 = vpack.c.b16 %v865, %v864
    %v877 = vpack.c.b16 %v867, %v866
    %v878 = vpack.c.b16 %v869, %v868
    %v879 = vpack.c.b16 %v871, %v870
    %888 = vmatprep.subr.bf16.mxu0 0
    %889 = vmatpush1.bf16.msra.mxu0 %v879
    %890 = vmatprep.subr.bf16.mxu0 0
    %891 = vmatpush1.bf16.msra.mxu0 %v878
    %892 = vmatprep.subr.bf16.mxu0 0
    %893 = vmatpush1.bf16.msra.mxu0 %v877
    %894 = vmatprep.subr.bf16.mxu0 0
    %895 = vmatpush1.bf16.msra.mxu0 %v876
    %896 = vmatprep.subr.bf16.mxu0 0
    %897 = vmatpush1.bf16.msra.mxu0 %v875
    %898 = vmatprep.subr.bf16.mxu0 0
    %899 = vmatpush1.bf16.msra.mxu0 %v874
    %900 = vmatprep.subr.bf16.mxu0 0
    %901 = vmatpush1.bf16.msra.mxu0 %v873
    %902 = vmatprep.subr.bf16.mxu0 0
    %903 = vmatpush1.bf16.msra.mxu0 %v872
    %904 = vmatprep.subr.bf16.mxu0 0
    %905 = vmatpush2.bf16.msra.mxu0 0
    %906 = vmatprep.subr.bf16.mxu0 0
    %907 = vmatpush2.bf16.msra.mxu0 0
    %908 = vmatprep.subr.bf16.mxu0 0
    %909 = vmatpush2.bf16.msra.mxu0 0
    %910 = vmatprep.subr.bf16.mxu0 0
    %911 = vmatpush2.bf16.msra.mxu0 0
    %912 = vmatprep.subr.bf16.mxu0 0
    %913 = vmatpush2.bf16.msra.mxu0 0
    %914 = vmatprep.subr.bf16.mxu0 0
    %915 = vmatpush2.bf16.msra.mxu0 0
    %916 = vmatprep.subr.bf16.mxu0 0
    %917 = vmatpush2.bf16.msra.mxu0 0
    %918 = vmatprep.subr.bf16.mxu0 0
    %919 = vmatpush2.bf16.msra.mxu0 0
    %920 = vmatprep.mubr.bf16.mxu0 0
    %921 = vmatmul.mubr.bf16.gmra.mxu0 %v813
    %v922 = vpop.f32.mrf.mxu0
    %v923 = vadd.f32 %v838, %v922
    %v924 = vpop.f32.mrf.mxu0
    %v925 = vpop.f32.mrf.mxu0
    %v926 = vpop.f32.mrf.mxu0
    %927 = vdwg.mxu0
    %v928 = vmax.f32 %v923, 0.0
    %v929 = vtanh.pop %v923
    %v930 = vsel %vm816, 1, 0
    %vm931 = vcmp.eq.s32.totalorder %v930, 1
    %v932 = vsel %vm931, %v928, %v929
    %v933 = vpack.c.bf16 %v932, %v932
    %v934 = vld [vmem:[#allocation10] sm:$0xf]
    %v935 = vld [vmem:[#allocation10 + $0x4] sm:$0xf]
    %v936 = vld [vmem:[#allocation10 + $0x8] sm:$0xf]
    %v937 = vld [vmem:[#allocation10 + $0xc] sm:$0xf]
    %v938 = vld [vmem:[#allocation10 + $0x10] sm:$0xf]
    %v939 = vld [vmem:[#allocation10 + $0x14] sm:$0xf]
    %v940 = vld [vmem:[#allocation10 + $0x18] sm:$0xf]
    %v941 = vld [vmem:[#allocation10 + $0x1c] sm:$0xf]
    %v942 = vld [vmem:[#allocation10 + $0x20] sm:$0xf]
    %v943 = vld [vmem:[#allocation10 + $0x24] sm:$0xf]
    %v944 = vld [vmem:[#allocation10 + $0x28] sm:$0xf]
    %v945 = vld [vmem:[#allocation10 + $0x2c] sm:$0xf]
    %v946 = vld [vmem:[#allocation10 + $0x30] sm:$0xf]
    %v947 = vld [vmem:[#allocation10 + $0x34] sm:$0xf]
    %v948 = vld [vmem:[#allocation10 + $0x38] sm:$0xf]
    %v949 = vld [vmem:[#allocation10 + $0x3c] sm:$0xf]
    %v950 = vld [vmem:[%s14] sm:$0x1]
    %v952 = vlaneseq
    %v953 = vshrl.u32 %v952, 7
    %v954 = vsub.s32 0, %v953
    %v955 = vrot.slane %v950, %v954
    %v973 = vunpack.c.l.b16 %v934
    %v974 = vunpack.c.l.b16 %v935
    %v975 = vunpack.c.l.b16 %v936
    %v976 = vunpack.c.l.b16 %v937
    %v977 = vunpack.c.l.b16 %v938
    %v978 = vunpack.c.l.b16 %v939
    %v979 = vunpack.c.l.b16 %v940
    %v980 = vunpack.c.l.b16 %v941
    %v981 = vunpack.c.l.b16 %v942
    %v982 = vunpack.c.l.b16 %v943
    %v983 = vunpack.c.l.b16 %v944
    %v984 = vunpack.c.l.b16 %v945
    %v985 = vunpack.c.l.b16 %v946
    %v986 = vunpack.c.l.b16 %v947
    %v987 = vunpack.c.l.b16 %v948
    %v988 = vunpack.c.l.b16 %v949
    %v989 = vpack.c.b16 %v974, %v973
    %v990 = vpack.c.b16 %v976, %v975
    %v991 = vpack.c.b16 %v978, %v977
    %v992 = vpack.c.b16 %v980, %v979
    %v993 = vpack.c.b16 %v982, %v981
    %v994 = vpack.c.b16 %v984, %v983
    %v995 = vpack.c.b16 %v986, %v985
    %v996 = vpack.c.b16 %v988, %v987
    %1005 = vmatprep.subr.bf16.mxu0 0
    %1006 = vmatpush1.bf16.msra.mxu0 %v996
    %1007 = vmatprep.subr.bf16.mxu0 0
    %1008 = vmatpush1.bf16.msra.mxu0 %v995
    %1009 = vmatprep.subr.bf16.mxu0 0
    %1010 = vmatpush1.bf16.msra.mxu0 %v994
    %1011 = vmatprep.subr.bf16.mxu0 0
    %1012 = vmatpush1.bf16.msra.mxu0 %v993
    %1013 = vmatprep.subr.bf16.mxu0 0
    %1014 = vmatpush1.bf16.msra.mxu0 %v992
    %1015 = vmatprep.subr.bf16.mxu0 0
    %1016 = vmatpush1.bf16.msra.mxu0 %v991
    %1017 = vmatprep.subr.bf16.mxu0 0
    %1018 = vmatpush1.bf16.msra.mxu0 %v990
    %1019 = vmatprep.subr.bf16.mxu0 0
    %1020 = vmatpush1.bf16.msra.mxu0 %v989
    %1021 = vmatprep.subr.bf16.mxu0 0
    %1022 = vmatpush2.bf16.msra.mxu0 0
    %1023 = vmatprep.subr.bf16.mxu0 0
    %1024 = vmatpush2.bf16.msra.mxu0 0
    %1025 = vmatprep.subr.bf16.mxu0 0
    %1026 = vmatpush2.bf16.msra.mxu0 0
    %1027 = vmatprep.subr.bf16.mxu0 0
    %1028 = vmatpush2.bf16.msra.mxu0 0
    %1029 = vmatprep.subr.bf16.mxu0 0
    %1030 = vmatpush2.bf16.msra.mxu0 0
    %1031 = vmatprep.subr.bf16.mxu0 0
    %1032 = vmatpush2.bf16.msra.mxu0 0
    %1033 = vmatprep.subr.bf16.mxu0 0
    %1034 = vmatpush2.bf16.msra.mxu0 0
    %1035 = vmatprep.subr.bf16.mxu0 0
    %1036 = vmatpush2.bf16.msra.mxu0 0
    %1037 = vmatprep.mubr.bf16.mxu0 0
    %1038 = vmatmul.mubr.bf16.gmra.mxu0 %v933
    %v1039 = vpop.f32.mrf.mxu0
    %v1040 = vadd.f32 %v955, %v1039
    %v1041 = vpop.f32.mrf.mxu0
    %v1042 = vpop.f32.mrf.mxu0
    %v1043 = vpop.f32.mrf.mxu0
    %1044 = vdwg.mxu0
    %v1045 = vmax.f32 %v1040, 0.0
    %v1046 = vtanh.pop %v1040
    %v1047 = vsel %vm931, %v1045, %v1046
    %v1048 = vpack.c.bf16 %v1047, %v1047
    %v1049 = vld [vmem:[#allocation12] sm:$0xf]
    %v1050 = vld [vmem:[#allocation12 + $0x4] sm:$0xf]
    %v1051 = vld [vmem:[#allocation12 + $0x8] sm:$0xf]
    %v1052 = vld [vmem:[#allocation12 + $0xc] sm:$0xf]
    %v1053 = vld [vmem:[#allocation12 + $0x10] sm:$0xf]
    %v1054 = vld [vmem:[#allocation12 + $0x14] sm:$0xf]
    %v1055 = vld [vmem:[#allocation12 + $0x18] sm:$0xf]
    %v1056 = vld [vmem:[#allocation12 + $0x1c] sm:$0xf]
    %v1057 = vld [vmem:[#allocation12 + $0x20] sm:$0xf]
    %v1058 = vld [vmem:[#allocation12 + $0x24] sm:$0xf]
    %v1059 = vld [vmem:[#allocation12 + $0x28] sm:$0xf]
    %v1060 = vld [vmem:[#allocation12 + $0x2c] sm:$0xf]
    %v1061 = vld [vmem:[#allocation12 + $0x30] sm:$0xf]
    %v1062 = vld [vmem:[#allocation12 + $0x34] sm:$0xf]
    %v1063 = vld [vmem:[#allocation12 + $0x38] sm:$0xf]
    %v1064 = vld [vmem:[#allocation12 + $0x3c] sm:$0xf]
    %v1065 = vld [vmem:[%s16] sm:$0x1]
    %v1067 = vlaneseq
    %v1068 = vshrl.u32 %v1067, 7
    %v1069 = vsub.s32 0, %v1068
    %v1070 = vrot.slane %v1065, %v1069
    %v1088 = vunpack.c.l.b16 %v1049
    %v1089 = vunpack.c.l.b16 %v1050
    %v1090 = vunpack.c.l.b16 %v1051
    %v1091 = vunpack.c.l.b16 %v1052
    %v1092 = vunpack.c.l.b16 %v1053
    %v1093 = vunpack.c.l.b16 %v1054
    %v1094 = vunpack.c.l.b16 %v1055
    %v1095 = vunpack.c.l.b16 %v1056
    %v1096 = vunpack.c.l.b16 %v1057
    %v1097 = vunpack.c.l.b16 %v1058
    %v1098 = vunpack.c.l.b16 %v1059
    %v1099 = vunpack.c.l.b16 %v1060
    %v1100 = vunpack.c.l.b16 %v1061
    %v1101 = vunpack.c.l.b16 %v1062
    %v1102 = vunpack.c.l.b16 %v1063
    %v1103 = vunpack.c.l.b16 %v1064
    %v1104 = vpack.c.b16 %v1089, %v1088
    %v1105 = vpack.c.b16 %v1091, %v1090
    %v1106 = vpack.c.b16 %v1093, %v1092
    %v1107 = vpack.c.b16 %v1095, %v1094
    %v1108 = vpack.c.b16 %v1097, %v1096
    %v1109 = vpack.c.b16 %v1099, %v1098
    %v1110 = vpack.c.b16 %v1101, %v1100
    %v1111 = vpack.c.b16 %v1103, %v1102
    %1120 = vmatprep.subr.bf16.mxu0 0
    %1121 = vmatpush1.bf16.msra.mxu0 %v1111
    %1122 = vmatprep.subr.bf16.mxu0 0
    %1123 = vmatpush1.bf16.msra.mxu0 %v1110
    %1124 = vmatprep.subr.bf16.mxu0 0
    %1125 = vmatpush1.bf16.msra.mxu0 %v1109
    %1126 = vmatprep.subr.bf16.mxu0 0
    %1127 = vmatpush1.bf16.msra.mxu0 %v1108
    %1128 = vmatprep.subr.bf16.mxu0 0
    %1129 = vmatpush1.bf16.msra.mxu0 %v1107
    %1130 = vmatprep.subr.bf16.mxu0 0
    %1131 = vmatpush1.bf16.msra.mxu0 %v1106
    %1132 = vmatprep.subr.bf16.mxu0 0
    %1133 = vmatpush1.bf16.msra.mxu0 %v1105
    %1134 = vmatprep.subr.bf16.mxu0 0
    %1135 = vmatpush1.bf16.msra.mxu0 %v1104
    %1136 = vmatprep.subr.bf16.mxu0 0
    %1137 = vmatpush2.bf16.msra.mxu0 0
    %1138 = vmatprep.subr.bf16.mxu0 0
    %1139 = vmatpush2.bf16.msra.mxu0 0
    %1140 = vmatprep.subr.bf16.mxu0 0
    %1141 = vmatpush2.bf16.msra.mxu0 0
    %1142 = vmatprep.subr.bf16.mxu0 0
    %1143 = vmatpush2.bf16.msra.mxu0 0
    %1144 = vmatprep.subr.bf16.mxu0 0
    %1145 = vmatpush2.bf16.msra.mxu0 0
    %1146 = vmatprep.subr.bf16.mxu0 0
    %1147 = vmatpush2.bf16.msra.mxu0 0
    %1148 = vmatprep.subr.bf16.mxu0 0
    %1149 = vmatpush2.bf16.msra.mxu0 0
    %1150 = vmatprep.subr.bf16.mxu0 0
    %1151 = vmatpush2.bf16.msra.mxu0 0
    %1152 = vmatprep.mubr.bf16.mxu0 0
    %1153 = vmatmul.mubr.bf16.gmra.mxu0 %v1048
    %v1154 = vpop.f32.mrf.mxu0
    %v1155 = vadd.f32 %v1070, %v1154
    %v1156 = vpop.f32.mrf.mxu0
    %v1157 = vpop.f32.mrf.mxu0
    %v1158 = vpop.f32.mrf.mxu0
    %1159 = vdwg.mxu0
    %1160 = vst [vmem:[%s17] sm:$0xff] %v1155
    // Predicated region
    $region98: #{mlp_forward.1} parent=1 // pred_check
      _
    $region99: #{mlp_forward.1} parent=1 // pred_check_branch
      %1162 = sbr.rel (0) target = $region101
    $region100: #{mlp_forward.1} parent=1 // pred_region
      _
    $region101: #{mlp_forward.1} parent=1 // pred_fallthru
      _
    // Predicated region
    $region102: #{mlp_forward.1} parent=1 // pred_check
      _
    $region103: #{mlp_forward.1} parent=1 // pred_check_branch
      %1164 = sbr.rel (0) target = $region105
    $region104: #{mlp_forward.1} parent=1 // pred_region
      _
    $region105: #{mlp_forward.1} parent=1 // pred_fallthru
      _
    %1165 = vsyncpa [#allocation3], 1
    %1166 = vsyncpa [#allocation5], 1
    %1167 = vsyncpa [#allocation8], 1
    %1168 = vsyncpa [#allocation11], 1

</llo_original>
